<compile_context>
chip_gen: v6e
topology: v6e:2x2x1
jax: 0.10.0
libtpu: 0.0.40
codegen_flags: <defaults>
</compile_context>

<pallas_src>
import functools

import jax
import jax.numpy as jnp
from jax.experimental import pallas as pl
from jax.experimental.pallas import tpu as pltpu

NBITS = 4
QP = float(2 ** (NBITS - 1) - 1)   # +7
QN = float(-(2 ** (NBITS - 1)))    # -8

_SUB = 16     # sublane multiple: safe for f32 (8) and bf16 (16) packed tiles
_LANE = 128


def _round_up(x, m):
    return (x + m - 1) // m * m


# ----------------------------------------------------------------------------
# Pallas kernel: fused fake-quant  y = round(clamp(x * (1/alpha^2), Qn, Qp)) * alpha
# Native-dtype in/out; math in f32 on the VPU (mem-bound, VALU has huge slack).
# ----------------------------------------------------------------------------
def _lutact_kernel(scal_ref, x_ref, o_ref, *, qn, qp):
    # scal_ref (SMEM, f32[2]) = [alpha, 1/alpha^2]
    alpha = scal_ref[0]
    inv_a2 = scal_ref[1]
    xf = x_ref[...].astype(jnp.float32)
    y = jnp.clip(xf * inv_a2, qn, qp)     # (x / alpha) / alpha, clamped
    y = jnp.round(y)                      # round_pass forward == round (half-to-even)
    o_ref[...] = (y * alpha).astype(o_ref.dtype)


def lutact_forward(x, alpha, *, lane=_LANE, max_rows=8192):
    """Applies LUTAct.forward (eval / post-init). x: any shape/float dtype, alpha: scalar."""
    orig_shape = x.shape
    dtype = x.dtype
    size = int(x.size)

    a = jnp.asarray(alpha, jnp.float32).reshape(())
    scal = jnp.stack([a, 1.0 / (a * a)])          # [alpha, 1/alpha^2] -> SMEM

    # Lane-dense 2-D layout: (rows, 128), rows a multiple of 16 (bf16-safe sublanes).
    rows = _round_up(pl.cdiv(size, lane), _SUB)
    padded = rows * lane

    flat = x.reshape(-1)                          # native dtype, no cast
    if padded != size:                            # pad is at most 16*128-1 elements
        flat = jnp.pad(flat, (0, padded - size))
    x2d = flat.reshape(rows, lane)

    # Tile: at least 2 grid steps when possible (v7x megacore), capped by max_rows.
    tr = min(max_rows, _round_up(pl.cdiv(rows, 2), _SUB))
    grid = (pl.cdiv(rows, tr),)                   # ragged last block handled by Pallas

    itemsize = jnp.dtype(dtype).itemsize
    kernel = functools.partial(_lutact_kernel, qn=QN, qp=QP)
    out = pl.pallas_call(
        kernel,
        out_shape=jax.ShapeDtypeStruct((rows, lane), dtype),
        grid_spec=pltpu.PrefetchScalarGridSpec(
            num_scalar_prefetch=0,
            grid=grid,
            in_specs=[
                pl.BlockSpec(memory_space=pltpu.MemorySpace.SMEM),  # [alpha, 1/alpha^2]
                pl.BlockSpec((tr, lane), lambda i: (i, 0)),
            ],
            out_specs=pl.BlockSpec((tr, lane), lambda i: (i, 0)),
        ),
        compiler_params=pltpu.CompilerParams(
            dimension_semantics=("parallel",),
            vmem_limit_bytes=32 << 20,            # safe on v5e/v6e/v7x; fits 4x4 MiB bufs
        ),
        cost_estimate=pl.CostEstimate(
            flops=5 * padded,
            transcendentals=0,
            bytes_accessed=2 * padded * itemsize + 8,
        ),
    )(scal, x2d)

    out = out.reshape(-1)
    if padded != size:
        out = out[:size]
    return out.reshape(orig_shape)


def init_alpha(x):
    """Mirrors LUTAct's first-training-call init: alpha = 2 * mean(|x|) / sqrt(Qp)."""
    return 2.0 * jnp.mean(jnp.abs(jnp.asarray(x, jnp.float32))) / jnp.sqrt(QP)


if __name__ == "__main__":
    key = jax.random.PRNGKey(0)
    x = jax.random.normal(key, (2, 4, 16, 16), jnp.float32)   # activations (N, C, H, W)

    alpha = init_alpha(x)                 # deterministic, matches the module's init branch

    # f32 path
    y = lutact_forward(x, alpha)
    y = jax.block_until_ready(y)
    assert y.shape == x.shape and y.dtype == x.dtype
    ref = jnp.round(jnp.clip(x / (alpha * alpha), QN, QP)) * alpha
    assert jnp.allclose(y, ref, atol=1e-5, rtol=1e-5), float(jnp.max(jnp.abs(y - ref)))

    # bf16 path (native-dtype kernel: no wrapper casts, bf16 streamed through HBM)
    x_bf = x.astype(jnp.bfloat16)
    y_bf = lutact_forward(x_bf, alpha)
    y_bf = jax.block_until_ready(y_bf)
    assert y_bf.shape == x.shape and y_bf.dtype == jnp.bfloat16
    ref_bf = (jnp.round(jnp.clip(x_bf.astype(jnp.float32) / (alpha * alpha), QN, QP))
              * alpha).astype(jnp.bfloat16)
    assert jnp.allclose(y_bf.astype(jnp.float32), ref_bf.astype(jnp.float32),
                        atol=1e-2, rtol=1e-2)

    print("KERNEL_OK")
</pallas_src>

<mosaic_0001>
module attributes {stable_mosaic.version = 11 : i64} {
  func.func @_lutact_kernel(%arg0: i32, %arg1: memref<2xf32, #tpu.memory_space<smem>>, %arg2: memref<16x128xf32, #tpu.memory_space<vmem>>, %arg3: memref<16x128xf32, #tpu.memory_space<vmem>>) attributes {dimension_semantics = [#tpu.dimension_semantics<parallel>], iteration_bounds = array<i64: 1>, scalar_prefetch = 0 : i64, scratch_operands = 0 : i64, tpu.core_type = #tpu.core_type<tc>, window_params = [{transform_indices = @transform_0, window_bounds = array<i64: 2>}, {transform_indices = @transform_1, window_bounds = array<i64: 16, 128>}, {transform_indices = @transform_2, window_bounds = array<i64: 16, 128>}]} {
    %c0 = arith.constant 0 : index
    %0 = memref.load %arg1[%c0] : memref<2xf32, #tpu.memory_space<smem>>
    %c1 = arith.constant 1 : index
    %1 = memref.load %arg1[%c1] : memref<2xf32, #tpu.memory_space<smem>>
    %c0_0 = arith.constant 0 : index
    %c0_1 = arith.constant 0 : index
    %2 = vector.load %arg2[%c0_0, %c0_1] : memref<16x128xf32, #tpu.memory_space<vmem>>, vector<16x128xf32>
    %3 = vector.broadcast %1 : f32 to vector<16x128xf32>
    %4 = arith.mulf %2, %3 : vector<16x128xf32>
    %cst = arith.constant -8.000000e+00 : f32
    %cst_2 = arith.constant 7.000000e+00 : f32
    %5 = vector.broadcast %cst : f32 to vector<16x128xf32>
    %6 = arith.maximumf %5, %4 : vector<16x128xf32>
    %7 = vector.broadcast %cst_2 : f32 to vector<16x128xf32>
    %8 = arith.minimumf %7, %6 : vector<16x128xf32>
    %9 = math.roundeven %8 : vector<16x128xf32>
    %10 = vector.broadcast %0 : f32 to vector<16x128xf32>
    %11 = arith.mulf %9, %10 : vector<16x128xf32>
    %c0_3 = arith.constant 0 : index
    %c0_4 = arith.constant 0 : index
    %12 = vector.load %arg3[%c0_3, %c0_4] : memref<16x128xf32, #tpu.memory_space<vmem>>, vector<16x128xf32>
    tpu.vector_store %arg3[%c0_3, %c0_4], %11 {strides = array<i32>} : memref<16x128xf32, #tpu.memory_space<vmem>>, vector<16x128xf32>,
    return
  }
  func.func @transform_0(%arg0: i32) -> i32 {
    %c0_i32 = arith.constant 0 : i32
    %c0_i32_0 = arith.constant 0 : i32
    return %c0_i32 : i32
  }
  func.func @transform_1(%arg0: i32) -> (i32, i32) {
    %c0_i32 = arith.constant 0 : i32
    %c0_i32_0 = arith.constant 0 : i32
    return %arg0, %c0_i32 : i32, i32
  }
  func.func @transform_2(%arg0: i32) -> (i32, i32) {
    %c0_i32 = arith.constant 0 : i32
    %c0_i32_0 = arith.constant 0 : i32
    return %arg0, %c0_i32 : i32, i32
  }
}

</mosaic_0001>

<llo_original>
// kernel: tpu_custom_call.1
$region0: #{tpu_custom_call.1}
  #allocation0 [shape = 'u32[]', space=smem, size = 0x4, offset = 0x4, fixed_abs, tag = 'smem constant byte address 0x4 - core index']
  #allocation1 [shape = 'u32[144,128]{1,0:T(1,128)}', space=vmem, size = 0x12000, scoped, tag = 'internal scratch']
  %s0 = inlined_call_operand.hbm [shape: f32[2], index: 0, kind: input, shape index: {}]
  %s1 = inlined_call_operand.hbm [shape: f32[16,128], index: 1, kind: input, shape index: {}]
  %s2 = inlined_call_operand.hbm [shape: f32[16,128], index: 2, kind: output, shape index: {}]
  %s3 = sld [smem:[#allocation0]]
  $region26: #{tpu_custom_call.1} parent=0
    _
  %s5 = ssub.s32 1, %s3
  %s6 = scalar_select 0, %s5, %s3
  $region1: #{tpu_custom_call.1} parent=0
    #allocation2 [shape = 'u8[512]{0}', space=smem, size = 0x200, scoped, tag = 'input window, operand 0, single buffered']
    #allocation3 [shape = 's32[1]{0}', space=sflag, size = 0x4, scoped, tag = 'scoped memory for tpu_custom_call.1']
    #allocation4 [shape = 's32[1]{0}', space=sflag, size = 0x4, scoped, tag = 'scoped memory for tpu_custom_call.1']
    #allocation5 [shape = 's32[1]{0}', space=sflag, size = 0x4, scoped, tag = 'scoped memory for tpu_custom_call.1']
    #allocation6 [shape = 'u8[8192]{0}', space=vmem, size = 0x2000, scoped, tag = 'input window, operand 1, single buffered']
    #allocation7 [shape = 'u8[8192]{0}', space=vmem, size = 0x2000, scoped, tag = 'output window, operand 0, single buffered']
    %7 = vsyncpa [#allocation5], 0
    %8 = vsyncpa [#allocation3], 0
    %9 = vsyncpa [#allocation4], 0
    // Predicated region
    $region2: #{tpu_custom_call.1} parent=1 // pred_check
      _
    $region3: #{tpu_custom_call.1} parent=1 // pred_check_branch
      %11 = sbr.rel (0) target = $region5
    $region4: #{tpu_custom_call.1} parent=1 // pred_region
      %s13 = ssub.s32 16, 16
      %14 = vsyncadd [#allocation5], %s13
      %17 = dma.hbm_to_smem %s0, 16, [#allocation2], [#allocation5]
    $region5: #{tpu_custom_call.1} parent=1 // pred_fallthru
      _
    // Predicated region
    $region6: #{tpu_custom_call.1} parent=1 // pred_check
      _
    $region7: #{tpu_custom_call.1} parent=1 // pred_check_branch
      %19 = sbr.rel (0) target = $region9
    $region8: #{tpu_custom_call.1} parent=1 // pred_region
      %s21 = ssub.s32 256, 256
      %22 = vsyncadd [#allocation3], %s21
      %s23 = sshll.u32 [#allocation6], 4
      %s24 = int_to_ptr.vmem [resolvable:$true] %s23
      %29 = dma.hbm_to_vmem [thread:$0]  %s1, 256, %s24, [#allocation3], 128, 128, 8
    $region9: #{tpu_custom_call.1} parent=1 // pred_fallthru
      _
    // Predicated region
    $region10: #{tpu_custom_call.1} parent=1 // pred_check
      _
    $region11: #{tpu_custom_call.1} parent=1 // pred_check_branch
      %31 = sbr.rel (0) target = $region13
    $region12: #{tpu_custom_call.1} parent=1 // pred_region
      %32 = dma.done [#allocation5], 16
    $region13: #{tpu_custom_call.1} parent=1 // pred_fallthru
      _
    // Predicated region
    $region14: #{tpu_custom_call.1} parent=1 // pred_check
      _
    $region15: #{tpu_custom_call.1} parent=1 // pred_check_branch
      %34 = sbr.rel (0) target = $region17
    $region16: #{tpu_custom_call.1} parent=1 // pred_region
      %35 = dma.done [#allocation3], 256
    $region17: #{tpu_custom_call.1} parent=1 // pred_fallthru
      _
    %36 = sfence
    %s37 = sld [smem:[#allocation2]]
    %s38 = sld [smem:[#allocation2 + $0x1]]
    %v39 = vld [vmem:[#allocation6] sm:$0xff]
    %v40 = vld [vmem:[#allocation6 + $0x8] sm:$0xff]
    %v41 = vstv %s38
    %v42 = vmul.f32 %v39, %v41
    %v43 = vmul.f32 %v40, %v41
    %v44 = vmax.f32 %v42, -8.0
    %v45 = vmax.f32 %v43, -8.0
    %v46 = vmin.f32 %v44, 7.0
    %v47 = vmin.f32 %v45, 7.0
    %v48 = vround.ne.pseudo %v46
    %v49 = vround.ne.pseudo %v47
    %v50 = vstv %s37
    %v51 = vmul.f32 %v48, %v50
    %v52 = vmul.f32 %v49, %v50
    %53 = vst [vmem:[#allocation7] sm:$0xff] %v51
    %54 = vst [vmem:[#allocation7 + $0x8] sm:$0xff] %v52
    // Predicated region
    $region18: #{tpu_custom_call.1} parent=1 // pred_check
      _
    $region19: #{tpu_custom_call.1} parent=1 // pred_check_branch
      %56 = sbr.rel (0) target = $region21
    $region20: #{tpu_custom_call.1} parent=1 // pred_region
      %s58 = ssub.s32 256, 256
      %59 = vsyncadd [#allocation4], %s58
      %s60 = sshll.u32 [#allocation7], 4
      %s61 = int_to_ptr.vmem [resolvable:$true] %s60
      %66 = dma.vmem_to_hbm [thread:$0]  %s61, 256, %s2, [#allocation4], 128, 128, 8
    $region21: #{tpu_custom_call.1} parent=1 // pred_fallthru
      _
    // Predicated region
    $region22: #{tpu_custom_call.1} parent=1 // pred_check
      _
    $region23: #{tpu_custom_call.1} parent=1 // pred_check_branch
      %68 = sbr.rel (0) target = $region25
    $region24: #{tpu_custom_call.1} parent=1 // pred_region
      %69 = dma.done [#allocation4], 256
    $region25: #{tpu_custom_call.1} parent=1 // pred_fallthru
      _
    %70 = vsyncpa [#allocation3], 1
    %71 = vsyncpa [#allocation4], 1
    %72 = vsyncpa [#allocation5], 1

</llo_original>
